<compile_context>
chip_gen: v6e
topology: v6e:2x2x1
jax: 0.10.0
libtpu: 0.0.40
codegen_flags: <defaults>
</compile_context>

<pallas_src>
import math
import numpy as np
import jax
import jax.numpy as jnp
from jax.experimental import pallas as pl
from jax.experimental.pallas import tpu as pltpu

BN_EPS = 1e-5  # PyTorch BatchNorm1d default


# --------------------------------- kernel ---------------------------------
def gin_kernel(idx_ref,    # (1, BE)   int32 scatter indices (-1 = padded row)
               feat_ref,   # (BE, Dc)  bf16 concat(target_node_feat, edge_feat)
               x_ref,      # (N, H)    f32 x_src_unique
               we_ref,     # (Dc, H)   bf16 edge_transform weight^T
               be_ref,     # (1, H)    f32 edge_transform bias
               w1_ref,     # (H, H)    f32 mlp_layer1^T (no bias)
               w2_ref,     # (H, O)    f32 mlp_layer2^T (no bias)
               bnw_ref,    # (1, H)    f32 BatchNorm weight
               bnb_ref,    # (1, H)    f32 BatchNorm bias
               eps_ref,    # (1, 1)    f32 GIN eps (SMEM)
               out_ref,    # (N, O)    f32
               agg_ref):   # (N, H)    f32 VMEM accumulator scratch
    e = pl.program_id(0)

    @pl.when(e == 0)
    def _init():
        agg_ref[...] = jnp.zeros_like(agg_ref)

    # relu(Linear(concat(target_feat, edge_feat))) -> messages, M = BE rows
    msgs = jnp.maximum(
        jnp.dot(feat_ref[...], we_ref[...],
                preferred_element_type=jnp.float32) + be_ref[...],
        0.0)                                                   # (BE, H) f32
    msgs_bf = msgs.astype(jnp.bfloat16)

    # scatter_add via one-hot matmul: onehot[n, e] = (idx[e] == n); exact in bf16
    n_rows = agg_ref.shape[0]
    block_e = idx_ref.shape[1]
    onehot = (jax.lax.broadcasted_iota(jnp.int32, (n_rows, block_e), 0)
              == idx_ref[...]).astype(jnp.bfloat16)            # (N, BE)
    agg_ref[...] += jnp.dot(onehot, msgs_bf,
                            preferred_element_type=jnp.float32)  # (N, H) f32

    # ----- epilogue: GIN update + MLP, once aggregation is complete -----
    @pl.when(e == pl.num_programs(0) - 1)
    def _finish():
        upd = (1.0 + eps_ref[0, 0]) * x_ref[...] + agg_ref[...]   # (N, H) f32
        h = jnp.dot(upd, w1_ref[...], preferred_element_type=jnp.float32)
        if n_rows > 1:  # static branch: PyTorch skips BatchNorm when batch == 1
            mu = jnp.mean(h, axis=0, keepdims=True)
            var = jnp.mean((h - mu) ** 2, axis=0, keepdims=True)  # biased var
            h = (h - mu) * jax.lax.rsqrt(var + BN_EPS) * bnw_ref[...] + bnb_ref[...]
        h = jnp.maximum(h, 0.0)
        out_ref[...] = jnp.dot(h, w2_ref[...],
                               preferred_element_type=jnp.float32)


# --------------------------------- wrapper ---------------------------------
def node_aggregate_gin_forward(x_src_unique, unique_src_to_process_indices,
                               path_source_indices_global,
                               path_target_node_features, path_edge_features,
                               params, max_block_e=2048):
    we, be, w1, w2, bn_w, bn_b, eps = params          # PyTorch (out, in) layout
    N, H = x_src_unique.shape
    O = w2.shape[0]
    E = path_source_indices_global.shape[0]
    Dc = path_target_node_features.shape[1] + path_edge_features.shape[1]

    # Edge-axis tiling: pad to a multiple of 128; collapse to ONE grid step if
    # the whole edge axis fits in max_block_e, otherwise tile at max_block_e.
    assert max_block_e % 128 == 0
    e_pad128 = max(128, ((E + 127) // 128) * 128)
    if e_pad128 <= max_block_e:
        block_e = e_pad128
    else:
        block_e = max_block_e
    e_pad = ((E + block_e - 1) // block_e) * block_e
    n_eb = e_pad // block_e
    pad = e_pad - E

    # host-side layout plumbing (one-time): concat features (-> bf16), pad the
    # edge axis (padded rows get index -1 -> dropped by one-hot), pre-transpose
    # weights so the kernel never transposes.
    comb = jnp.concatenate([path_target_node_features, path_edge_features],
                           axis=-1).astype(jnp.bfloat16)
    comb = jnp.pad(comb, ((0, pad), (0, 0)))
    idx2d = jnp.pad(path_source_indices_global.astype(jnp.int32), (0, pad),
                    constant_values=-1).reshape(1, e_pad)

    we_t = jnp.transpose(we).astype(jnp.bfloat16)     # (Dc, H) streamed-path bf16
    w1_t = jnp.transpose(w1).astype(jnp.float32)      # (H, H) epilogue f32
    w2_t = jnp.transpose(w2).astype(jnp.float32)      # (H, O) epilogue f32
    be2 = be.reshape(1, H).astype(jnp.float32)
    bnw2 = bn_w.reshape(1, H).astype(jnp.float32)
    bnb2 = bn_b.reshape(1, H).astype(jnp.float32)
    eps2 = jnp.reshape(eps, (1, 1)).astype(jnp.float32)

    # Deeper buffering on the streamed edge blocks only pays off when there
    # are several grid steps to hide HBM latency behind.
    stream_kw = {"pipeline_mode": pl.Buffered(3)} if n_eb >= 3 else {}

    grid_spec = pltpu.PrefetchScalarGridSpec(
        num_scalar_prefetch=0,
        grid=(n_eb,),
        in_specs=[
            pl.BlockSpec((1, block_e), lambda e: (0, e), **stream_kw),   # indices
            pl.BlockSpec((block_e, Dc), lambda e: (e, 0), **stream_kw),  # features
            pl.BlockSpec((N, H), lambda e: (0, 0)),          # x_src_unique
            pl.BlockSpec((Dc, H), lambda e: (0, 0)),         # edge weight^T
            pl.BlockSpec((1, H), lambda e: (0, 0)),          # edge bias
            pl.BlockSpec((H, H), lambda e: (0, 0)),          # mlp_layer1^T
            pl.BlockSpec((H, O), lambda e: (0, 0)),          # mlp_layer2^T
            pl.BlockSpec((1, H), lambda e: (0, 0)),          # bn weight
            pl.BlockSpec((1, H), lambda e: (0, 0)),          # bn bias
            pl.BlockSpec(memory_space=pltpu.MemorySpace.SMEM),  # eps (scalar)
        ],
        out_specs=pl.BlockSpec((N, O), lambda e: (0, 0)),
        scratch_shapes=[pltpu.VMEM((N, H), jnp.float32)],
    )

    # Explicit VMEM budget so a too-big problem fails at compile, not by
    # silent spilling (v7x has half the VMEM of v5e/v6e).
    buffers = 3 if n_eb >= 3 else 2
    vmem_bytes = (buffers * block_e * (4 + 2 * Dc)        # idx + feat streams
                  + N * H * 4 * 2                         # x + agg scratch
                  + N * O * 4 * 2                         # out (double-buffered)
                  + Dc * H * 2 + H * H * 4 + H * O * 4 + 4 * H * 4)
    cp_kwargs = {"dimension_semantics": ("arbitrary",)}
    if vmem_bytes * 2 > (32 << 20):
        assert vmem_bytes < (56 << 20), "problem too large: tile the node axis"
        cp_kwargs["vmem_limit_bytes"] = min(vmem_bytes * 2, 56 << 20)

    out = pl.pallas_call(
        gin_kernel,
        out_shape=jax.ShapeDtypeStruct((N, O), jnp.float32),
        grid_spec=grid_spec,
        compiler_params=pltpu.CompilerParams(**cp_kwargs),
    )(idx2d, comb, x_src_unique.astype(jnp.float32),
      we_t, be2, w1_t, w2_t, bnw2, bnb2, eps2)

    return out, unique_src_to_process_indices


# --------------------------- deterministic params ---------------------------
def init_params(key, node_dim, edge_dim, hidden_dim, output_dim, init_eps=0.0):
    ks = jax.random.split(key, 6)

    def xavier(k, shape):
        fan_out, fan_in = shape
        lim = math.sqrt(6.0 / (fan_in + fan_out))
        return jax.random.uniform(k, shape, jnp.float32, -lim, lim)

    dc = node_dim + edge_dim
    we = xavier(ks[0], (hidden_dim, dc))                          # edge_transform W
    be = 0.05 * jax.random.normal(ks[1], (hidden_dim,), jnp.float32)
    w1 = xavier(ks[2], (hidden_dim, hidden_dim))                  # mlp_layer1 (no bias)
    w2 = xavier(ks[3], (output_dim, hidden_dim))                  # mlp_layer2 (no bias)
    bn_w = 1.0 + 0.1 * jax.random.normal(ks[4], (hidden_dim,), jnp.float32)
    bn_b = 0.1 * jax.random.normal(ks[5], (hidden_dim,), jnp.float32)
    eps = jnp.float32(init_eps)
    return (we, be, w1, w2, bn_w, bn_b, eps)


# ----------------------------- plain-JAX reference -----------------------------
def reference_forward(x, unique_idx, src_idx, tgt_feats, edge_feats, params):
    we, be, w1, w2, bn_w, bn_b, eps = params
    comb = jnp.concatenate([tgt_feats, edge_feats], axis=-1)
    msgs = jax.nn.relu(comb @ we.T + be)
    n = x.shape[0]
    agg = jnp.zeros((n, we.shape[0]), jnp.float32).at[src_idx].add(msgs)
    upd = (1.0 + eps) * x + agg
    h = upd @ w1.T
    if n > 1:
        mu = jnp.mean(h, axis=0, keepdims=True)
        var = jnp.mean((h - mu) ** 2, axis=0, keepdims=True)
        h = (h - mu) / jnp.sqrt(var + BN_EPS) * bn_w + bn_b
    h = jax.nn.relu(h)
    return h @ w2.T, unique_idx


if __name__ == "__main__":
    key = jax.random.PRNGKey(0)
    kx, ki, kt, ke, kp, ku = jax.random.split(key, 6)

    N, E = 16, 200                    # unique source nodes, neighbor paths
    NODE_DIM, EDGE_DIM = 24, 8        # input_node_dim, input_edge_dim
    HID, OUT = 32, 32                 # hidden_dim, output_dim

    x_src_unique = jax.random.normal(kx, (N, HID), jnp.float32)
    unique_src_idx = jax.random.permutation(
        ku, jnp.arange(1000, dtype=jnp.int32))[:N]
    path_src_idx = jax.random.randint(ki, (E,), 0, N, jnp.int32)
    path_tgt_feats = jax.random.normal(kt, (E, NODE_DIM), jnp.float32)
    path_edge_feats = jax.random.normal(ke, (E, EDGE_DIM), jnp.float32)
    params = init_params(kp, NODE_DIM, EDGE_DIM, HID, OUT)

    out, idx_out = node_aggregate_gin_forward(
        x_src_unique, unique_src_idx, path_src_idx,
        path_tgt_feats, path_edge_feats, params)
    out = jax.block_until_ready(out)
    assert out.shape == (N, OUT), out.shape

    ref, ref_idx = reference_forward(
        x_src_unique, unique_src_idx, path_src_idx,
        path_tgt_feats, path_edge_feats, params)
    np.testing.assert_allclose(np.asarray(out), np.asarray(ref),
                               atol=2e-2, rtol=2e-2)
    np.testing.assert_array_equal(np.asarray(idx_out),
                                  np.asarray(unique_src_idx))

    print("KERNEL_OK")
</pallas_src>

<mosaic_0001>
module attributes {stable_mosaic.version = 11 : i64} {
  func.func @gin_kernel(%arg0: i32, %arg1: memref<1x256xi32, #tpu.memory_space<vmem>>, %arg2: memref<256x32xbf16, #tpu.memory_space<vmem>>, %arg3: memref<16x32xf32, #tpu.memory_space<vmem>>, %arg4: memref<32x32xbf16, #tpu.memory_space<vmem>>, %arg5: memref<1x32xf32, #tpu.memory_space<vmem>>, %arg6: memref<32x32xf32, #tpu.memory_space<vmem>>, %arg7: memref<32x32xf32, #tpu.memory_space<vmem>>, %arg8: memref<1x32xf32, #tpu.memory_space<vmem>>, %arg9: memref<1x32xf32, #tpu.memory_space<vmem>>, %arg10: memref<1x1xf32, #tpu.memory_space<smem>>, %arg11: memref<16x32xf32, #tpu.memory_space<vmem>>, %arg12: memref<16x32xf32, #tpu.memory_space<vmem>>) attributes {dimension_semantics = [#tpu.dimension_semantics<arbitrary>], iteration_bounds = array<i64: 1>, scalar_prefetch = 0 : i64, scratch_operands = 1 : i64, tpu.core_type = #tpu.core_type<tc>, window_params = [{transform_indices = @transform_0, window_bounds = array<i64: 1, 256>}, {transform_indices = @transform_1, window_bounds = array<i64: 256, 32>}, {pipeline_mode = #tpu.pipeline_mode<synchronous>, transform_indices = @transform_2, window_bounds = array<i64: 16, 32>}, {pipeline_mode = #tpu.pipeline_mode<synchronous>, transform_indices = @transform_3, window_bounds = array<i64: 32, 32>}, {pipeline_mode = #tpu.pipeline_mode<synchronous>, transform_indices = @transform_4, window_bounds = array<i64: 1, 32>}, {pipeline_mode = #tpu.pipeline_mode<synchronous>, transform_indices = @transform_5, window_bounds = array<i64: 32, 32>}, {pipeline_mode = #tpu.pipeline_mode<synchronous>, transform_indices = @transform_6, window_bounds = array<i64: 32, 32>}, {pipeline_mode = #tpu.pipeline_mode<synchronous>, transform_indices = @transform_7, window_bounds = array<i64: 1, 32>}, {pipeline_mode = #tpu.pipeline_mode<synchronous>, transform_indices = @transform_8, window_bounds = array<i64: 1, 32>}, {transform_indices = @transform_9, window_bounds = array<i64: 1, 1>}, {pipeline_mode = #tpu.pipeline_mode<synchronous>, transform_indices = @transform_10, window_bounds = array<i64: 16, 32>}]} {
    %c0_i32 = arith.constant 0 : i32
    %0 = arith.cmpi eq, %arg0, %c0_i32 : i32
    %1 = arith.extui %0 : i1 to i32
    %c0_i32_0 = arith.constant 0 : i32
    %2 = arith.cmpi ne, %1, %c0_i32_0 : i32
    scf.if %2 {
      %cst_16 = arith.constant 0.000000e+00 : f32
      %26 = vector.broadcast %cst_16 : f32 to vector<16x32xf32>
      %c0_17 = arith.constant 0 : index
      %c0_18 = arith.constant 0 : index
      %27 = vector.load %arg12[%c0_17, %c0_18] : memref<16x32xf32, #tpu.memory_space<vmem>>, vector<16x32xf32>
      tpu.vector_store %arg12[%c0_17, %c0_18], %26 {strides = array<i32>} : memref<16x32xf32, #tpu.memory_space<vmem>>, vector<16x32xf32>,
    } else {
    }
    %c0 = arith.constant 0 : index
    %c0_1 = arith.constant 0 : index
    %3 = vector.load %arg2[%c0, %c0_1] : memref<256x32xbf16, #tpu.memory_space<vmem>>, vector<256x32xbf16>
    %c0_2 = arith.constant 0 : index
    %c0_3 = arith.constant 0 : index
    %4 = vector.load %arg4[%c0_2, %c0_3] : memref<32x32xbf16, #tpu.memory_space<vmem>>, vector<32x32xbf16>
    %cst = arith.constant dense<0.000000e+00> : vector<256x32xf32>
    %5 = tpu.matmul %3, %4, %cst {dimension_numbers = #tpu.dot_dimension_numbers<[1], [0], [0], [1], [0, 0, 1, 1], [], []>} : vector<256x32xbf16>, vector<32x32xbf16>, vector<256x32xf32> -> vector<256x32xf32>
    %c0_4 = arith.constant 0 : index
    %c0_5 = arith.constant 0 : index
    %6 = vector.load %arg5[%c0_4, %c0_5] : memref<1x32xf32, #tpu.memory_space<vmem>>, vector<1x32xf32>
    %7 = vector.broadcast %6 : vector<1x32xf32> to vector<256x32xf32>
    %8 = arith.addf %5, %7 : vector<256x32xf32>
    %cst_6 = arith.constant 0.000000e+00 : f32
    %9 = vector.broadcast %cst_6 : f32 to vector<256x32xf32>
    %10 = arith.maximumf %8, %9 : vector<256x32xf32>
    %11 = arith.truncf %10 : vector<256x32xf32> to vector<256x32xbf16>
    %12 = tpu.iota {dimensions = array<i32: 0>} : vector<16x256xi32>
    %c0_7 = arith.constant 0 : index
    %c0_8 = arith.constant 0 : index
    %13 = vector.load %arg1[%c0_7, %c0_8] : memref<1x256xi32, #tpu.memory_space<vmem>>, vector<1x256xi32>
    %14 = vector.broadcast %13 : vector<1x256xi32> to vector<16x256xi32>
    %15 = arith.cmpi eq, %12, %14 : vector<16x256xi32>
    %16 = arith.extui %15 : vector<16x256xi1> to vector<16x256xi32>
    %17 = arith.sitofp %16 : vector<16x256xi32> to vector<16x256xf32>
    %18 = arith.truncf %17 : vector<16x256xf32> to vector<16x256xbf16>
    %c0_9 = arith.constant 0 : index
    %c0_10 = arith.constant 0 : index
    %19 = vector.load %arg12[%c0_9, %c0_10] : memref<16x32xf32, #tpu.memory_space<vmem>>, vector<16x32xf32>
    %cst_11 = arith.constant dense<0.000000e+00> : vector<16x32xf32>
    %20 = tpu.matmul %18, %11, %cst_11 {dimension_numbers = #tpu.dot_dimension_numbers<[1], [0], [0], [1], [0, 0, 1, 1], [], []>} : vector<16x256xbf16>, vector<256x32xbf16>, vector<16x32xf32> -> vector<16x32xf32>
    %21 = arith.addf %19, %20 : vector<16x32xf32>
    %c0_12 = arith.constant 0 : index
    %c0_13 = arith.constant 0 : index
    %22 = vector.load %arg12[%c0_12, %c0_13] : memref<16x32xf32, #tpu.memory_space<vmem>>, vector<16x32xf32>
    tpu.vector_store %arg12[%c0_12, %c0_13], %21 {strides = array<i32>} : memref<16x32xf32, #tpu.memory_space<vmem>>, vector<16x32xf32>,
    %c0_i32_14 = arith.constant 0 : i32
    %23 = arith.cmpi eq, %arg0, %c0_i32_14 : i32
    %24 = arith.extui %23 : i1 to i32
    %c0_i32_15 = arith.constant 0 : i32
    %25 = arith.cmpi ne, %24, %c0_i32_15 : i32
    scf.if %25 {
      %c0_16 = arith.constant 0 : index
      %c0_17 = arith.constant 0 : index
      %26 = memref.load %arg10[%c0_16, %c0_17] : memref<1x1xf32, #tpu.memory_space<smem>>
      %cst_18 = arith.constant 1.000000e+00 : f32
      %27 = arith.addf %cst_18, %26 : f32
      %c0_19 = arith.constant 0 : index
      %c0_20 = arith.constant 0 : index
      %28 = vector.load %arg3[%c0_19, %c0_20] : memref<16x32xf32, #tpu.memory_space<vmem>>, vector<16x32xf32>
      %29 = vector.broadcast %27 : f32 to vector<16x32xf32>
      %30 = arith.mulf %29, %28 : vector<16x32xf32>
      %c0_21 = arith.constant 0 : index
      %c0_22 = arith.constant 0 : index
      %31 = vector.load %arg12[%c0_21, %c0_22] : memref<16x32xf32, #tpu.memory_space<vmem>>, vector<16x32xf32>
      %32 = arith.addf %30, %31 : vector<16x32xf32>
      %c0_23 = arith.constant 0 : index
      %c0_24 = arith.constant 0 : index
      %33 = vector.load %arg6[%c0_23, %c0_24] : memref<32x32xf32, #tpu.memory_space<vmem>>, vector<32x32xf32>
      %cst_25 = arith.constant dense<0.000000e+00> : vector<16x32xf32>
      %34 = tpu.matmul %32, %33, %cst_25 {dimension_numbers = #tpu.dot_dimension_numbers<[1], [0], [0], [1], [0, 0, 1, 1], [], []>} : vector<16x32xf32>, vector<32x32xf32>, vector<16x32xf32> -> vector<16x32xf32>
      %cst_26 = arith.constant dense<0.000000e+00> : vector<32xf32>
      %35 = vector.multi_reduction <add>, %34, %cst_26 [0] : vector<16x32xf32> to vector<32xf32>
      %36 = vector.shape_cast %35 : vector<32xf32> to vector<1x32xf32>
      %cst_27 = arith.constant 1.600000e+01 : f32
      %37 = vector.broadcast %cst_27 : f32 to vector<1x32xf32>
      %38 = arith.divf %36, %37 : vector<1x32xf32>
      %39 = vector.broadcast %38 : vector<1x32xf32> to vector<16x32xf32>
      %40 = arith.subf %34, %39 : vector<16x32xf32>
      %41 = arith.mulf %40, %40 : vector<16x32xf32>
      %cst_28 = arith.constant dense<0.000000e+00> : vector<32xf32>
      %42 = vector.multi_reduction <add>, %41, %cst_28 [0] : vector<16x32xf32> to vector<32xf32>
      %43 = vector.shape_cast %42 : vector<32xf32> to vector<1x32xf32>
      %cst_29 = arith.constant 1.600000e+01 : f32
      %44 = vector.broadcast %cst_29 : f32 to vector<1x32xf32>
      %45 = arith.divf %43, %44 : vector<1x32xf32>
      %46 = vector.broadcast %38 : vector<1x32xf32> to vector<16x32xf32>
      %47 = arith.subf %34, %46 : vector<16x32xf32>
      %cst_30 = arith.constant 9.99999974E-6 : f32
      %48 = vector.broadcast %cst_30 : f32 to vector<1x32xf32>
      %49 = arith.addf %45, %48 : vector<1x32xf32>
      %50 = math.rsqrt %49 : vector<1x32xf32>
      %51 = vector.broadcast %50 : vector<1x32xf32> to vector<16x32xf32>
      %52 = arith.mulf %47, %51 : vector<16x32xf32>
      %c0_31 = arith.constant 0 : index
      %c0_32 = arith.constant 0 : index
      %53 = vector.load %arg8[%c0_31, %c0_32] : memref<1x32xf32, #tpu.memory_space<vmem>>, vector<1x32xf32>
      %54 = vector.broadcast %53 : vector<1x32xf32> to vector<16x32xf32>
      %55 = arith.mulf %52, %54 : vector<16x32xf32>
      %c0_33 = arith.constant 0 : index
      %c0_34 = arith.constant 0 : index
      %56 = vector.load %arg9[%c0_33, %c0_34] : memref<1x32xf32, #tpu.memory_space<vmem>>, vector<1x32xf32>
      %57 = vector.broadcast %56 : vector<1x32xf32> to vector<16x32xf32>
      %58 = arith.addf %55, %57 : vector<16x32xf32>
      %cst_35 = arith.constant 0.000000e+00 : f32
      %59 = vector.broadcast %cst_35 : f32 to vector<16x32xf32>
      %60 = arith.maximumf %58, %59 : vector<16x32xf32>
      %c0_36 = arith.constant 0 : index
      %c0_37 = arith.constant 0 : index
      %61 = vector.load %arg7[%c0_36, %c0_37] : memref<32x32xf32, #tpu.memory_space<vmem>>, vector<32x32xf32>
      %cst_38 = arith.constant dense<0.000000e+00> : vector<16x32xf32>
      %62 = tpu.matmul %60, %61, %cst_38 {dimension_numbers = #tpu.dot_dimension_numbers<[1], [0], [0], [1], [0, 0, 1, 1], [], []>} : vector<16x32xf32>, vector<32x32xf32>, vector<16x32xf32> -> vector<16x32xf32>
      %c0_39 = arith.constant 0 : index
      %c0_40 = arith.constant 0 : index
      %63 = vector.load %arg11[%c0_39, %c0_40] : memref<16x32xf32, #tpu.memory_space<vmem>>, vector<16x32xf32>
      tpu.vector_store %arg11[%c0_39, %c0_40], %62 {strides = array<i32>} : memref<16x32xf32, #tpu.memory_space<vmem>>, vector<16x32xf32>,
    } else {
    }
    return
  }
  func.func @transform_0(%arg0: i32) -> (i32, i32) {
    %c0_i32 = arith.constant 0 : i32
    %c0_i32_0 = arith.constant 0 : i32
    return %c0_i32, %arg0 : i32, i32
  }
  func.func @transform_1(%arg0: i32) -> (i32, i32) {
    %c0_i32 = arith.constant 0 : i32
    %c0_i32_0 = arith.constant 0 : i32
    return %arg0, %c0_i32 : i32, i32
  }
  func.func @transform_2(%arg0: i32) -> (i32, i32) {
    %c0_i32 = arith.constant 0 : i32
    %c0_i32_0 = arith.constant 0 : i32
    %c0_i32_1 = arith.constant 0 : i32
    return %c0_i32, %c0_i32_0 : i32, i32
  }
  func.func @transform_3(%arg0: i32) -> (i32, i32) {
    %c0_i32 = arith.constant 0 : i32
    %c0_i32_0 = arith.constant 0 : i32
    %c0_i32_1 = arith.constant 0 : i32
    return %c0_i32, %c0_i32_0 : i32, i32
  }
  func.func @transform_4(%arg0: i32) -> (i32, i32) {
    %c0_i32 = arith.constant 0 : i32
    %c0_i32_0 = arith.constant 0 : i32
    %c0_i32_1 = arith.constant 0 : i32
    return %c0_i32, %c0_i32_0 : i32, i32
  }
  func.func @transform_5(%arg0: i32) -> (i32, i32) {
    %c0_i32 = arith.constant 0 : i32
    %c0_i32_0 = arith.constant 0 : i32
    %c0_i32_1 = arith.constant 0 : i32
    return %c0_i32, %c0_i32_0 : i32, i32
  }
  func.func @transform_6(%arg0: i32) -> (i32, i32) {
    %c0_i32 = arith.constant 0 : i32
    %c0_i32_0 = arith.constant 0 : i32
    %c0_i32_1 = arith.constant 0 : i32
    return %c0_i32, %c0_i32_0 : i32, i32
  }
  func.func @transform_7(%arg0: i32) -> (i32, i32) {
    %c0_i32 = arith.constant 0 : i32
    %c0_i32_0 = arith.constant 0 : i32
    %c0_i32_1 = arith.constant 0 : i32
    return %c0_i32, %c0_i32_0 : i32, i32
  }
  func.func @transform_8(%arg0: i32) -> (i32, i32) {
    %c0_i32 = arith.constant 0 : i32
    %c0_i32_0 = arith.constant 0 : i32
    %c0_i32_1 = arith.constant 0 : i32
    return %c0_i32, %c0_i32_0 : i32, i32
  }
  func.func @transform_9(%arg0: i32) -> (i32, i32) {
    %c0_i32 = arith.constant 0 : i32
    %c0_i32_0 = arith.constant 0 : i32
    %c0_i32_1 = arith.constant 0 : i32
    return %c0_i32, %c0_i32_0 : i32, i32
  }
  func.func @transform_10(%arg0: i32) -> (i32, i32) {
    %c0_i32 = arith.constant 0 : i32
    %c0_i32_0 = arith.constant 0 : i32
    %c0_i32_1 = arith.constant 0 : i32
    return %c0_i32, %c0_i32_0 : i32, i32
  }
}

</mosaic_0001>

<llo_original>
// kernel: tpu_custom_call.1
$region0: #{tpu_custom_call.1}
  #allocation0 [shape = 'u32[]', space=smem, size = 0x4, offset = 0x4, fixed_abs, tag = 'smem constant byte address 0x4 - core index']
  #allocation1 [shape = 'u32[144,128]{1,0:T(1,128)}', space=vmem, size = 0x12000, scoped, tag = 'internal scratch']
  #allocation2 [shape = 'f32[16,32]{1,0:T(8,128)}', space=vmem, size = 0x2000, scoped, tag = 'scratch operand']
  #allocation3 [shape = 'f32[1,1]{1,0:T(1,128)S(6)}', space=smem, size = 0x200, scoped, tag = 'scoped memory for tpu_custom_call.1']
  %s0 = inlined_call_operand.vmem [shape: s32[1,256], index: 0, kind: input, shape index: {}]
  %s1 = inlined_call_operand.vmem [shape: bf16[256,32], index: 1, kind: input, shape index: {}]
  %s2 = inlined_call_operand.vmem [shape: f32[16,32], index: 2, kind: input, shape index: {}]
  %s3 = inlined_call_operand.vmem [shape: bf16[32,32], index: 3, kind: input, shape index: {}]
  %s4 = inlined_call_operand.vmem [shape: f32[1,32], index: 4, kind: input, shape index: {}]
  %s5 = inlined_call_operand.vmem [shape: f32[32,32], index: 5, kind: input, shape index: {}]
  %s6 = inlined_call_operand.vmem [shape: f32[32,32], index: 6, kind: input, shape index: {}]
  %s7 = inlined_call_operand.vmem [shape: f32[1,32], index: 7, kind: input, shape index: {}]
  %s8 = inlined_call_operand.vmem [shape: f32[1,32], index: 8, kind: input, shape index: {}]
  %s9 = inlined_call_operand.<no memory space> [shape: f32[1,1], index: 9, kind: input, shape index: {}]
  %s10 = inlined_call_operand.hbm [shape: f32[16,32], index: 10, kind: output, shape index: {}]
  %s11 = sld [smem:[#allocation0]]
  $region58: #{tpu_custom_call.1} parent=0
    _
  %s13 = ssub.s32 1, %s11
  %s14 = scalar_select 0, %s13, %s11
  %15 = sst [smem:[#allocation3]] %s9
  $region1: #{tpu_custom_call.1} parent=0
    #allocation4 [shape = 'u8[8192]{0}', space=vmem, size = 0x2000, scoped, tag = 'output window, operand 0, single buffered']
    #allocation5 [shape = 's32[1]{0}', space=sflag, size = 0x4, scoped, tag = 'scoped memory for tpu_custom_call.1']
    %16 = vsyncpa [#allocation5], 0
    // Predicated region
    $region2: #{tpu_custom_call.1} parent=1 // pred_check
      _
    $region3: #{tpu_custom_call.1} parent=1 // pred_check_branch
      %18 = sbr.rel (0) target = $region5
    $region4: #{tpu_custom_call.1} parent=1 // pred_region
      _
    $region5: #{tpu_custom_call.1} parent=1 // pred_fallthru
      _
    // Predicated region
    $region6: #{tpu_custom_call.1} parent=1 // pred_check
      _
    $region7: #{tpu_custom_call.1} parent=1 // pred_check_branch
      %20 = sbr.rel (0) target = $region9
    $region8: #{tpu_custom_call.1} parent=1 // pred_region
      _
    $region9: #{tpu_custom_call.1} parent=1 // pred_fallthru
      _
    // Predicated region
    $region10: #{tpu_custom_call.1} parent=1 // pred_check
      _
    $region11: #{tpu_custom_call.1} parent=1 // pred_check_branch
      %22 = sbr.rel (0) target = $region13
    $region12: #{tpu_custom_call.1} parent=1 // pred_region
      _
    $region13: #{tpu_custom_call.1} parent=1 // pred_fallthru
      _
    // Predicated region
    $region14: #{tpu_custom_call.1} parent=1 // pred_check
      _
    $region15: #{tpu_custom_call.1} parent=1 // pred_check_branch
      %24 = sbr.rel (0) target = $region17
    $region16: #{tpu_custom_call.1} parent=1 // pred_region
      _
    $region17: #{tpu_custom_call.1} parent=1 // pred_fallthru
      _
    // Predicated region
    $region18: #{tpu_custom_call.1} parent=1 // pred_check
      _
    $region19: #{tpu_custom_call.1} parent=1 // pred_check_branch
      %26 = sbr.rel (0) target = $region21
    $region20: #{tpu_custom_call.1} parent=1 // pred_region
      _
    $region21: #{tpu_custom_call.1} parent=1 // pred_fallthru
      _
    // Predicated region
    $region22: #{tpu_custom_call.1} parent=1 // pred_check
      _
    $region23: #{tpu_custom_call.1} parent=1 // pred_check_branch
      %28 = sbr.rel (0) target = $region25
    $region24: #{tpu_custom_call.1} parent=1 // pred_region
      _
    $region25: #{tpu_custom_call.1} parent=1 // pred_fallthru
      _
    // Predicated region
    $region26: #{tpu_custom_call.1} parent=1 // pred_check
      _
    $region27: #{tpu_custom_call.1} parent=1 // pred_check_branch
      %30 = sbr.rel (0) target = $region29
    $region28: #{tpu_custom_call.1} parent=1 // pred_region
      _
    $region29: #{tpu_custom_call.1} parent=1 // pred_fallthru
      _
    // Predicated region
    $region30: #{tpu_custom_call.1} parent=1 // pred_check
      _
    $region31: #{tpu_custom_call.1} parent=1 // pred_check_branch
      %32 = sbr.rel (0) target = $region33
    $region32: #{tpu_custom_call.1} parent=1 // pred_region
      _
    $region33: #{tpu_custom_call.1} parent=1 // pred_fallthru
      _
    // Predicated region
    $region34: #{tpu_custom_call.1} parent=1 // pred_check
      _
    $region35: #{tpu_custom_call.1} parent=1 // pred_check_branch
      %34 = sbr.rel (0) target = $region37
    $region36: #{tpu_custom_call.1} parent=1 // pred_region
      _
    $region37: #{tpu_custom_call.1} parent=1 // pred_fallthru
      _
    // Predicated region
    $region38: #{tpu_custom_call.1} parent=1 // pred_check
      _
    $region39: #{tpu_custom_call.1} parent=1 // pred_check_branch
      %36 = sbr.rel (0) target = $region41
    $region40: #{tpu_custom_call.1} parent=1 // pred_region
      _
    $region41: #{tpu_custom_call.1} parent=1 // pred_fallthru
      _
    %p38 = scmp.eq.s32.totalorder 0, 0
    // Predicated region
    $region42: #{tpu_custom_call.1} parent=1 // pred_check
      %p39 = pneg %p38
    $region43: #{tpu_custom_call.1} parent=1 // pred_check_branch
      %41 = sbr.rel (%p39) target = $region45
    $region44: #{tpu_custom_call.1} parent=1 // pred_region
      %vm42 = vcmask 261120
      %43 = vst.msk [vmem:[#allocation2] sm:$0xff] %vm42, 0.0
      %44 = vst.msk [vmem:[#allocation2 + $0x8] sm:$0xff] %vm42, 0.0
    $region45: #{tpu_custom_call.1} parent=1 // pred_fallthru
      _
    %v45 = vld [vmem:[%s1] sm:$0xf]
    %v46 = vld [vmem:[%s1 + $0x4] sm:$0xf]
    %v47 = vld [vmem:[%s1 + $0x8] sm:$0xf]
    %v48 = vld [vmem:[%s1 + $0xc] sm:$0xf]
    %v49 = vld [vmem:[%s1 + $0x10] sm:$0xf]
    %v50 = vld [vmem:[%s1 + $0x14] sm:$0xf]
    %v51 = vld [vmem:[%s1 + $0x18] sm:$0xf]
    %v52 = vld [vmem:[%s1 + $0x1c] sm:$0xf]
    %v53 = vld [vmem:[%s1 + $0x20] sm:$0xf]
    %v54 = vld [vmem:[%s1 + $0x24] sm:$0xf]
    %v55 = vld [vmem:[%s1 + $0x28] sm:$0xf]
    %v56 = vld [vmem:[%s1 + $0x2c] sm:$0xf]
    %v57 = vld [vmem:[%s1 + $0x30] sm:$0xf]
    %v58 = vld [vmem:[%s1 + $0x34] sm:$0xf]
    %v59 = vld [vmem:[%s1 + $0x38] sm:$0xf]
    %v60 = vld [vmem:[%s1 + $0x3c] sm:$0xf]
    %v61 = vld [vmem:[%s1 + $0x40] sm:$0xf]
    %v62 = vld [vmem:[%s1 + $0x44] sm:$0xf]
    %v63 = vld [vmem:[%s1 + $0x48] sm:$0xf]
    %v64 = vld [vmem:[%s1 + $0x4c] sm:$0xf]
    %v65 = vld [vmem:[%s1 + $0x50] sm:$0xf]
    %v66 = vld [vmem:[%s1 + $0x54] sm:$0xf]
    %v67 = vld [vmem:[%s1 + $0x58] sm:$0xf]
    %v68 = vld [vmem:[%s1 + $0x5c] sm:$0xf]
    %v69 = vld [vmem:[%s1 + $0x60] sm:$0xf]
    %v70 = vld [vmem:[%s1 + $0x64] sm:$0xf]
    %v71 = vld [vmem:[%s1 + $0x68] sm:$0xf]
    %v72 = vld [vmem:[%s1 + $0x6c] sm:$0xf]
    %v73 = vld [vmem:[%s1 + $0x70] sm:$0xf]
    %v74 = vld [vmem:[%s1 + $0x74] sm:$0xf]
    %v75 = vld [vmem:[%s1 + $0x78] sm:$0xf]
    %v76 = vld [vmem:[%s1 + $0x7c] sm:$0xf]
    %v77 = vld [vmem:[%s3] sm:$0xf]
    %v78 = vld [vmem:[%s3 + $0x4] sm:$0xf]
    %v79 = vld [vmem:[%s3 + $0x8] sm:$0xf]
    %v80 = vld [vmem:[%s3 + $0xc] sm:$0xf]
    %v81 = vld [vmem:[%s4] sm:$0x1]
    %v83 = vlaneseq
    %v84 = vshrl.u32 %v83, 7
    %v85 = vsub.s32 0, %v84
    %v86 = vrot.slane %v81, %v85
    %v120 = vunpack.c.l.b16 %v45
    %v121 = vunpack.c.l.b16 %v46
    %v122 = vunpack.c.l.b16 %v47
    %v123 = vunpack.c.l.b16 %v48
    %v124 = vunpack.c.l.b16 %v49
    %v125 = vunpack.c.l.b16 %v50
    %v126 = vunpack.c.l.b16 %v51
    %v127 = vunpack.c.l.b16 %v52
    %v128 = vunpack.c.l.b16 %v53
    %v129 = vunpack.c.l.b16 %v54
    %v130 = vunpack.c.l.b16 %v55
    %v131 = vunpack.c.l.b16 %v56
    %v132 = vunpack.c.l.b16 %v57
    %v133 = vunpack.c.l.b16 %v58
    %v134 = vunpack.c.l.b16 %v59
    %v135 = vunpack.c.l.b16 %v60
    %v136 = vunpack.c.l.b16 %v61
    %v137 = vunpack.c.l.b16 %v62
    %v138 = vunpack.c.l.b16 %v63
    %v139 = vunpack.c.l.b16 %v64
    %v140 = vunpack.c.l.b16 %v65
    %v141 = vunpack.c.l.b16 %v66
    %v142 = vunpack.c.l.b16 %v67
    %v143 = vunpack.c.l.b16 %v68
    %v144 = vunpack.c.l.b16 %v69
    %v145 = vunpack.c.l.b16 %v70
    %v146 = vunpack.c.l.b16 %v71
    %v147 = vunpack.c.l.b16 %v72
    %v148 = vunpack.c.l.b16 %v73
    %v149 = vunpack.c.l.b16 %v74
    %v150 = vunpack.c.l.b16 %v75
    %v151 = vunpack.c.l.b16 %v76
    %v152 = vpack.c.b16 %v121, %v120
    %v153 = vpack.c.b16 %v123, %v122
    %v154 = vpack.c.b16 %v125, %v124
    %v155 = vpack.c.b16 %v127, %v126
    %v156 = vpack.c.b16 %v129, %v128
    %v157 = vpack.c.b16 %v131, %v130
    %v158 = vpack.c.b16 %v133, %v132
    %v159 = vpack.c.b16 %v135, %v134
    %v160 = vpack.c.b16 %v137, %v136
    %v161 = vpack.c.b16 %v139, %v138
    %v162 = vpack.c.b16 %v141, %v140
    %v163 = vpack.c.b16 %v143, %v142
    %v164 = vpack.c.b16 %v145, %v144
    %v165 = vpack.c.b16 %v147, %v146
    %v166 = vpack.c.b16 %v149, %v148
    %v167 = vpack.c.b16 %v151, %v150
    %v172 = vunpack.c.l.b16 %v77
    %v173 = vunpack.c.l.b16 %v78
    %v174 = vunpack.c.l.b16 %v79
    %v175 = vunpack.c.l.b16 %v80
    %v176 = vpack.c.b16 %v173, %v172
    %v177 = vpack.c.b16 %v175, %v174
    %vm180 = vcmask 261120
    %v182 = vsel %vm180, %v152, 0
    %v185 = vsel %vm180, %v153, 0
    %v188 = vsel %vm180, %v154, 0
    %v191 = vsel %vm180, %v155, 0
    %v194 = vsel %vm180, %v156, 0
    %v197 = vsel %vm180, %v157, 0
    %v200 = vsel %vm180, %v158, 0
    %v203 = vsel %vm180, %v159, 0
    %v206 = vsel %vm180, %v160, 0
    %v209 = vsel %vm180, %v161, 0
    %v212 = vsel %vm180, %v162, 0
    %v215 = vsel %vm180, %v163, 0
    %v218 = vsel %vm180, %v164, 0
    %v221 = vsel %vm180, %v165, 0
    %v224 = vsel %vm180, %v166, 0
    %v227 = vsel %vm180, %v167, 0
    %229 = vmatprep.subr.bf16.mxu0 0
    %230 = vmatpush1.bf16.msra.mxu0 0
    %231 = vmatprep.subr.bf16.mxu0 0
    %232 = vmatpush1.bf16.msra.mxu0 0
    %233 = vmatprep.subr.bf16.mxu0 0
    %234 = vmatpush1.bf16.msra.mxu0 0
    %235 = vmatprep.subr.bf16.mxu0 0
    %236 = vmatpush1.bf16.msra.mxu0 0
    %237 = vmatprep.subr.bf16.mxu0 0
    %238 = vmatpush1.bf16.msra.mxu0 0
    %239 = vmatprep.subr.bf16.mxu0 0
    %240 = vmatpush1.bf16.msra.mxu0 0
    %241 = vmatprep.subr.bf16.mxu0 0
    %242 = vmatpush1.bf16.msra.mxu0 %v177
    %243 = vmatprep.subr.bf16.mxu0 0
    %244 = vmatpush1.bf16.msra.mxu0 %v176
    %245 = vmatprep.subr.bf16.mxu0 0
    %246 = vmatpush2.bf16.msra.mxu0 0
    %247 = vmatprep.subr.bf16.mxu0 0
    %248 = vmatpush2.bf16.msra.mxu0 0
    %249 = vmatprep.subr.bf16.mxu0 0
    %250 = vmatpush2.bf16.msra.mxu0 0
    %251 = vmatprep.subr.bf16.mxu0 0
    %252 = vmatpush2.bf16.msra.mxu0 0
    %253 = vmatprep.subr.bf16.mxu0 0
    %254 = vmatpush2.bf16.msra.mxu0 0
    %255 = vmatprep.subr.bf16.mxu0 0
    %256 = vmatpush2.bf16.msra.mxu0 0
    %257 = vmatprep.subr.bf16.mxu0 0
    %258 = vmatpush2.bf16.msra.mxu0 0
    %259 = vmatprep.subr.bf16.mxu0 0
    %260 = vmatpush2.bf16.msra.mxu0 0
    %261 = vmatprep.mubr.bf16.mxu0 0
    %262 = vmatmul.mubr.bf16.gmra.mxu0 %v182
    %v263 = vpop.f32.mrf.mxu0
    %v264 = vadd.f32 %v86, %v263
    %v265 = vpop.f32.mrf.mxu0
    %v266 = vpop.f32.mrf.mxu0
    %v267 = vadd.f32 %v86, %v266
    %v268 = vpop.f32.mrf.mxu0
    %269 = vmatprep.mubr.bf16.mxu0 0
    %270 = vmatmul.mubr.bf16.gmra.mxu0 %v185
    %v271 = vpop.f32.mrf.mxu0
    %v272 = vadd.f32 %v86, %v271
    %v273 = vpop.f32.mrf.mxu0
    %v274 = vpop.f32.mrf.mxu0
    %v275 = vadd.f32 %v86, %v274
    %v276 = vpop.f32.mrf.mxu0
    %277 = vmatprep.mubr.bf16.mxu0 0
    %278 = vmatmul.mubr.bf16.gmra.mxu0 %v188
    %v279 = vpop.f32.mrf.mxu0
    %v280 = vadd.f32 %v86, %v279
    %v281 = vpop.f32.mrf.mxu0
    %v282 = vpop.f32.mrf.mxu0
    %v283 = vadd.f32 %v86, %v282
    %v284 = vpop.f32.mrf.mxu0
    %285 = vmatprep.mubr.bf16.mxu0 0
    %286 = vmatmul.mubr.bf16.gmra.mxu0 %v191
    %v287 = vpop.f32.mrf.mxu0
    %v288 = vadd.f32 %v86, %v287
    %v289 = vpop.f32.mrf.mxu0
    %v290 = vpop.f32.mrf.mxu0
    %v291 = vadd.f32 %v86, %v290
    %v292 = vpop.f32.mrf.mxu0
    %293 = vmatprep.mubr.bf16.mxu0 0
    %294 = vmatmul.mubr.bf16.gmra.mxu0 %v194
    %v295 = vpop.f32.mrf.mxu0
    %v296 = vadd.f32 %v86, %v295
    %v297 = vpop.f32.mrf.mxu0
    %v298 = vpop.f32.mrf.mxu0
    %v299 = vadd.f32 %v86, %v298
    %v300 = vpop.f32.mrf.mxu0
    %301 = vmatprep.mubr.bf16.mxu0 0
    %302 = vmatmul.mubr.bf16.gmra.mxu0 %v197
    %v303 = vpop.f32.mrf.mxu0
    %v304 = vadd.f32 %v86, %v303
    %v305 = vpop.f32.mrf.mxu0
    %v306 = vpop.f32.mrf.mxu0
    %v307 = vadd.f32 %v86, %v306
    %v308 = vpop.f32.mrf.mxu0
    %309 = vmatprep.mubr.bf16.mxu0 0
    %310 = vmatmul.mubr.bf16.gmra.mxu0 %v200
    %v311 = vpop.f32.mrf.mxu0
    %v312 = vadd.f32 %v86, %v311
    %v313 = vpop.f32.mrf.mxu0
    %v314 = vpop.f32.mrf.mxu0
    %v315 = vadd.f32 %v86, %v314
    %v316 = vpop.f32.mrf.mxu0
    %317 = vmatprep.mubr.bf16.mxu0 0
    %318 = vmatmul.mubr.bf16.gmra.mxu0 %v203
    %v319 = vpop.f32.mrf.mxu0
    %v320 = vadd.f32 %v86, %v319
    %v321 = vpop.f32.mrf.mxu0
    %v322 = vpop.f32.mrf.mxu0
    %v323 = vadd.f32 %v86, %v322
    %v324 = vpop.f32.mrf.mxu0
    %325 = vmatprep.mubr.bf16.mxu0 0
    %326 = vmatmul.mubr.bf16.gmra.mxu0 %v206
    %v327 = vpop.f32.mrf.mxu0
    %v328 = vadd.f32 %v86, %v327
    %v329 = vpop.f32.mrf.mxu0
    %v330 = vpop.f32.mrf.mxu0
    %v331 = vadd.f32 %v86, %v330
    %v332 = vpop.f32.mrf.mxu0
    %333 = vmatprep.mubr.bf16.mxu0 0
    %334 = vmatmul.mubr.bf16.gmra.mxu0 %v209
    %v335 = vpop.f32.mrf.mxu0
    %v336 = vadd.f32 %v86, %v335
    %v337 = vpop.f32.mrf.mxu0
    %v338 = vpop.f32.mrf.mxu0
    %v339 = vadd.f32 %v86, %v338
    %v340 = vpop.f32.mrf.mxu0
    %341 = vmatprep.mubr.bf16.mxu0 0
    %342 = vmatmul.mubr.bf16.gmra.mxu0 %v212
    %v343 = vpop.f32.mrf.mxu0
    %v344 = vadd.f32 %v86, %v343
    %v345 = vpop.f32.mrf.mxu0
    %v346 = vpop.f32.mrf.mxu0
    %v347 = vadd.f32 %v86, %v346
    %v348 = vpop.f32.mrf.mxu0
    %349 = vmatprep.mubr.bf16.mxu0 0
    %350 = vmatmul.mubr.bf16.gmra.mxu0 %v215
    %v351 = vpop.f32.mrf.mxu0
    %v352 = vadd.f32 %v86, %v351
    %v353 = vpop.f32.mrf.mxu0
    %v354 = vpop.f32.mrf.mxu0
    %v355 = vadd.f32 %v86, %v354
    %v356 = vpop.f32.mrf.mxu0
    %357 = vmatprep.mubr.bf16.mxu0 0
    %358 = vmatmul.mubr.bf16.gmra.mxu0 %v218
    %v359 = vpop.f32.mrf.mxu0
    %v360 = vadd.f32 %v86, %v359
    %v361 = vpop.f32.mrf.mxu0
    %v362 = vpop.f32.mrf.mxu0
    %v363 = vadd.f32 %v86, %v362
    %v364 = vpop.f32.mrf.mxu0
    %365 = vmatprep.mubr.bf16.mxu0 0
    %366 = vmatmul.mubr.bf16.gmra.mxu0 %v221
    %v367 = vpop.f32.mrf.mxu0
    %v368 = vadd.f32 %v86, %v367
    %v369 = vpop.f32.mrf.mxu0
    %v370 = vpop.f32.mrf.mxu0
    %v371 = vadd.f32 %v86, %v370
    %v372 = vpop.f32.mrf.mxu0
    %373 = vmatprep.mubr.bf16.mxu0 0
    %374 = vmatmul.mubr.bf16.gmra.mxu0 %v224
    %v375 = vpop.f32.mrf.mxu0
    %v376 = vadd.f32 %v86, %v375
    %v377 = vpop.f32.mrf.mxu0
    %v378 = vpop.f32.mrf.mxu0
    %v379 = vadd.f32 %v86, %v378
    %v380 = vpop.f32.mrf.mxu0
    %381 = vmatprep.mubr.bf16.mxu0 0
    %382 = vmatmul.mubr.bf16.gmra.mxu0 %v227
    %v383 = vpop.f32.mrf.mxu0
    %v384 = vadd.f32 %v86, %v383
    %v385 = vpop.f32.mrf.mxu0
    %v386 = vpop.f32.mrf.mxu0
    %v387 = vadd.f32 %v86, %v386
    %v388 = vpop.f32.mrf.mxu0
    %389 = vdwg.mxu0
    %v390 = vmax.f32 %v264, 0.0
    %v391 = vmax.f32 %v267, 0.0
    %v392 = vmax.f32 %v272, 0.0
    %v393 = vmax.f32 %v275, 0.0
    %v394 = vmax.f32 %v280, 0.0
    %v395 = vmax.f32 %v283, 0.0
    %v396 = vmax.f32 %v288, 0.0
    %v397 = vmax.f32 %v291, 0.0
    %v398 = vmax.f32 %v296, 0.0
    %v399 = vmax.f32 %v299, 0.0
    %v400 = vmax.f32 %v304, 0.0
    %v401 = vmax.f32 %v307, 0.0
    %v402 = vmax.f32 %v312, 0.0
    %v403 = vmax.f32 %v315, 0.0
    %v404 = vmax.f32 %v320, 0.0
    %v405 = vmax.f32 %v323, 0.0
    %v406 = vmax.f32 %v328, 0.0
    %v407 = vmax.f32 %v331, 0.0
    %v408 = vmax.f32 %v336, 0.0
    %v409 = vmax.f32 %v339, 0.0
    %v410 = vmax.f32 %v344, 0.0
    %v411 = vmax.f32 %v347, 0.0
    %v412 = vmax.f32 %v352, 0.0
    %v413 = vmax.f32 %v355, 0.0
    %v414 = vmax.f32 %v360, 0.0
    %v415 = vmax.f32 %v363, 0.0
    %v416 = vmax.f32 %v368, 0.0
    %v417 = vmax.f32 %v371, 0.0
    %v418 = vmax.f32 %v376, 0.0
    %v419 = vmax.f32 %v379, 0.0
    %v420 = vmax.f32 %v384, 0.0
    %v421 = vmax.f32 %v387, 0.0
    %v422 = vpack.c.bf16 %v391, %v390
    %v423 = vpack.c.bf16 %v393, %v392
    %v424 = vpack.c.bf16 %v395, %v394
    %v425 = vpack.c.bf16 %v397, %v396
    %v426 = vpack.c.bf16 %v399, %v398
    %v427 = vpack.c.bf16 %v401, %v400
    %v428 = vpack.c.bf16 %v403, %v402
    %v429 = vpack.c.bf16 %v405, %v404
    %v430 = vpack.c.bf16 %v407, %v406
    %v431 = vpack.c.bf16 %v409, %v408
    %v432 = vpack.c.bf16 %v411, %v410
    %v433 = vpack.c.bf16 %v413, %v412
    %v434 = vpack.c.bf16 %v415, %v414
    %v435 = vpack.c.bf16 %v417, %v416
    %v436 = vpack.c.bf16 %v419, %v418
    %v437 = vpack.c.bf16 %v421, %v420
    %v438 = vlaneseq
    %v439 = vshrl.u32 %v438, 7
    %v440 = vadd.s32 %v439, 8
    %v441 = vld [vmem:[%s0] sm:$0x3]
    %v442 = vlaneseq
    %v443 = vshrl.u32 %v442, 7
    %v444 = vsub.s32 0, %v443
    %v445 = vrot.slane %v441, %v444
    %v446 = vlaneseq
    %v447 = vshrl.u32 %v446, 7
    %v448 = vsub.s32 1, %v447
    %v449 = vrot.slane %v441, %v448
    %vm450 = vcmp.eq.s32.totalorder %v439, %v445
    %vm451 = vcmp.eq.s32.totalorder %v439, %v449
    %vm452 = vcmp.eq.s32.totalorder %v440, %v445
    %vm453 = vcmp.eq.s32.totalorder %v440, %v449
    %v454 = vsel %vm450, 1, 0
    %v455 = vsel %vm451, 1, 0
    %v456 = vsel %vm452, 1, 0
    %v457 = vsel %vm453, 1, 0
    %v458 = vcvt.s32.f32 %v454
    %v459 = vcvt.s32.f32 %v455
    %v460 = vcvt.s32.f32 %v456
    %v461 = vcvt.s32.f32 %v457
    %v462 = vpack.c.bf16 %v460, %v458
    %v463 = vpack.c.bf16 %v461, %v459
    %v464 = vld [vmem:[#allocation2] sm:$0xff]
    %v465 = vld [vmem:[#allocation2 + $0x8] sm:$0xff]
    %466 = vmatprep.subr.bf16.mxu0 0
    %467 = vmatpush1.bf16.msra.mxu0 %v429
    %468 = vmatprep.subr.bf16.mxu0 0
    %469 = vmatpush1.bf16.msra.mxu0 %v428
    %470 = vmatprep.subr.bf16.mxu0 0
    %471 = vmatpush1.bf16.msra.mxu0 %v427
    %472 = vmatprep.subr.bf16.mxu0 0
    %473 = vmatpush1.bf16.msra.mxu0 %v426
    %474 = vmatprep.subr.bf16.mxu0 0
    %475 = vmatpush1.bf16.msra.mxu0 %v425
    %476 = vmatprep.subr.bf16.mxu0 0
    %477 = vmatpush1.bf16.msra.mxu0 %v424
    %478 = vmatprep.subr.bf16.mxu0 0
    %479 = vmatpush1.bf16.msra.mxu0 %v423
    %480 = vmatprep.subr.bf16.mxu0 0
    %481 = vmatpush1.bf16.msra.mxu0 %v422
    %482 = vmatprep.subr.bf16.mxu0 0
    %483 = vmatpush2.bf16.msra.mxu0 %v437
    %484 = vmatprep.subr.bf16.mxu0 0
    %485 = vmatpush2.bf16.msra.mxu0 %v436
    %486 = vmatprep.subr.bf16.mxu0 0
    %487 = vmatpush2.bf16.msra.mxu0 %v435
    %488 = vmatprep.subr.bf16.mxu0 0
    %489 = vmatpush2.bf16.msra.mxu0 %v434
    %490 = vmatprep.subr.bf16.mxu0 0
    %491 = vmatpush2.bf16.msra.mxu0 %v433
    %492 = vmatprep.subr.bf16.mxu0 0
    %493 = vmatpush2.bf16.msra.mxu0 %v432
    %494 = vmatprep.subr.bf16.mxu0 0
    %495 = vmatpush2.bf16.msra.mxu0 %v431
    %496 = vmatprep.subr.bf16.mxu0 0
    %497 = vmatpush2.bf16.msra.mxu0 %v430
    %498 = vmatprep.mubr.bf16.mxu0 %v463
    %499 = vmatmul.mubr.bf16.gmra.mxu0 %v462
    %v500 = vpop.f32.mrf.mxu0
    %v501 = vadd.f32 0.0, %v500
    %v502 = vpop.f32.mrf.mxu0
    %v503 = vpop.f32.mrf.mxu0
    %v504 = vadd.f32 0.0, %v503
    %v505 = vpop.f32.mrf.mxu0
    %506 = vdwg.mxu0
    %v507 = vadd.f32 %v464, %v501
    %v508 = vadd.f32 %v465, %v504
    %509 = vst.msk [vmem:[#allocation2] sm:$0xff] %vm180, %v507
    %510 = vst.msk [vmem:[#allocation2 + $0x8] sm:$0xff] %vm180, %v508
    // Predicated region
    $region46: #{tpu_custom_call.1} parent=1 // pred_check
      %p511 = pneg %p38
    $region47: #{tpu_custom_call.1} parent=1 // pred_check_branch
      %513 = sbr.rel (%p511) target = $region49
    $region48: #{tpu_custom_call.1} parent=1 // pred_region
      %s514 = sld [smem:[#allocation3]]
      %s515 = sadd.f32 %s514, 1.0
      %v516 = vld [vmem:[%s2] sm:$0xff]
      %v517 = vld [vmem:[%s2 + $0x8] sm:$0xff]
      %v518 = vstv %s515
      %v519 = vmul.f32 %v518, %v516
      %v520 = vmul.f32 %v518, %v517
      %v521 = vld [vmem:[#allocation2] sm:$0xff]
      %v522 = vld [vmem:[#allocation2 + $0x8] sm:$0xff]
      %v523 = vadd.f32 %v519, %v521
      %v524 = vadd.f32 %v520, %v522
      %v525 = vld [vmem:[%s5] sm:$0xff]
      %v526 = vld [vmem:[%s5 + $0x8] sm:$0xff]
      %v527 = vld [vmem:[%s5 + $0x10] sm:$0xff]
      %v528 = vld [vmem:[%s5 + $0x18] sm:$0xff]
      %v530 = vsel %vm180, %v523, 0
      %v533 = vsel %vm180, %v524, 0
      %535 = vmatprep.subr.mxu0 0.0
      %536 = vmatpush1.msra.mxu0 0.0
      %537 = vmatprep.subr.mxu0 0.0
      %538 = vmatpush1.msra.mxu0 0.0
      %539 = vmatprep.subr.mxu0 0.0
      %540 = vmatpush1.msra.mxu0 0.0
      %541 = vmatprep.subr.mxu0 0.0
      %542 = vmatpush1.msra.mxu0 0.0
      %543 = vmatprep.subr.mxu0 0.0
      %544 = vmatpush1.msra.mxu0 0.0
      %545 = vmatprep.subr.mxu0 0.0
      %546 = vmatpush1.msra.mxu0 0.0
      %547 = vmatprep.subr.mxu0 0.0
      %548 = vmatpush1.msra.mxu0 0.0
      %549 = vmatprep.subr.mxu0 0.0
      %550 = vmatpush1.msra.mxu0 0.0
      %551 = vmatprep.subr.mxu0 0.0
      %552 = vmatpush1.msra.mxu0 0.0
      %553 = vmatprep.subr.mxu0 0.0
      %554 = vmatpush1.msra.mxu0 0.0
      %555 = vmatprep.subr.mxu0 0.0
      %556 = vmatpush1.msra.mxu0 0.0
      %557 = vmatprep.subr.mxu0 0.0
      %558 = vmatpush1.msra.mxu0 0.0
      %559 = vmatprep.subr.mxu0 0.0
      %560 = vmatpush1.msra.mxu0 %v528
      %561 = vmatprep.subr.mxu0 0.0
      %562 = vmatpush1.msra.mxu0 %v527
      %563 = vmatprep.subr.mxu0 0.0
      %564 = vmatpush1.msra.mxu0 %v526
      %565 = vmatprep.subr.mxu0 0.0
      %566 = vmatpush1.msra.mxu0 %v525
      %567 = vmatprep.subr.mxu0 0.0
      %568 = vmatpush2.msra.mxu0 0.0
      %569 = vmatprep.subr.mxu0 0.0
      %570 = vmatpush2.msra.mxu0 0.0
      %571 = vmatprep.subr.mxu0 0.0
      %572 = vmatpush2.msra.mxu0 0.0
      %573 = vmatprep.subr.mxu0 0.0
      %574 = vmatpush2.msra.mxu0 0.0
      %575 = vmatprep.subr.mxu0 0.0
      %576 = vmatpush2.msra.mxu0 0.0
      %577 = vmatprep.subr.mxu0 0.0
      %578 = vmatpush2.msra.mxu0 0.0
      %579 = vmatprep.subr.mxu0 0.0
      %580 = vmatpush2.msra.mxu0 0.0
      %581 = vmatprep.subr.mxu0 0.0
      %582 = vmatpush2.msra.mxu0 0.0
      %583 = vmatprep.subr.mxu0 0.0
      %584 = vmatpush2.msra.mxu0 0.0
      %585 = vmatprep.subr.mxu0 0.0
      %586 = vmatpush2.msra.mxu0 0.0
      %587 = vmatprep.subr.mxu0 0.0
      %588 = vmatpush2.msra.mxu0 0.0
      %589 = vmatprep.subr.mxu0 0.0
      %590 = vmatpush2.msra.mxu0 0.0
      %591 = vmatprep.subr.mxu0 0.0
      %592 = vmatpush2.msra.mxu0 0.0
      %593 = vmatprep.subr.mxu0 0.0
      %594 = vmatpush2.msra.mxu0 0.0
      %595 = vmatprep.subr.mxu0 0.0
      %596 = vmatpush2.msra.mxu0 0.0
      %597 = vmatprep.subr.mxu0 0.0
      %598 = vmatpush2.msra.mxu0 0.0
      %599 = vmatprep.mubr.f32.mxu0 0.0
      %600 = vmatmul.mubr.f32.gmra.mxu0 %v530
      %v601 = vpop.f32.mrf.mxu0
      %v602 = vadd.f32 0.0, %v601
      %v603 = vpop.f32.mrf.mxu0
      %604 = vmatprep.mubr.f32.mxu0 0.0
      %605 = vmatmul.mubr.f32.gmra.mxu0 %v533
      %v606 = vpop.f32.mrf.mxu0
      %v607 = vadd.f32 0.0, %v606
      %v608 = vpop.f32.mrf.mxu0
      %609 = vdwg.mxu0
      %v610 = vsel %vm180, %v602, 0.0
      %v611 = vsel %vm180, %v607, 0.0
      %v612 = vadd.f32 %v610, %v611
      %v613 = vrot.slane %v612, 4
      %v614 = vadd.f32 %v612, %v613
      %v615 = vrot.slane %v614, 2
      %v616 = vadd.f32 %v614, %v615
      %v617 = vrot.slane %v616, 1
      %v618 = vadd.f32 %v616, %v617
      %v619 = vrcp.pop 16.0
      %v620 = vmul.f32 %v618, %v619
      %v621 = vsub.f32 %v602, %v620
      %v622 = vsub.f32 %v607, %v620
      %v623 = vmul.f32 %v621, %v621
      %v624 = vmul.f32 %v622, %v622
      %v625 = vsel %vm180, %v623, 0.0
      %v626 = vsel %vm180, %v624, 0.0
      %v627 = vadd.f32 %v625, %v626
      %v628 = vrot.slane %v627, 4
      %v629 = vadd.f32 %v627, %v628
      %v630 = vrot.slane %v629, 2
      %v631 = vadd.f32 %v629, %v630
      %v632 = vrot.slane %v631, 1
      %v633 = vadd.f32 %v631, %v632
      %v634 = vmul.f32 %v633, %v619
      %v635 = vadd.f32 %v634, 1e-05
      %v636 = vrsqrt.pop %v635
      %v637 = vmul.f32 %v621, %v636
      %v638 = vmul.f32 %v622, %v636
      %v639 = vld [vmem:[%s7] sm:$0x1]
      %v641 = vlaneseq
      %v642 = vshrl.u32 %v641, 7
      %v643 = vsub.s32 0, %v642
      %v644 = vrot.slane %v639, %v643
      %v646 = vmul.f32 %v637, %v644
      %v647 = vmul.f32 %v638, %v644
      %v648 = vld [vmem:[%s8] sm:$0x1]
      %v650 = vlaneseq
      %v651 = vshrl.u32 %v650, 7
      %v652 = vsub.s32 0, %v651
      %v653 = vrot.slane %v648, %v652
      %v655 = vadd.f32 %v646, %v653
      %v656 = vadd.f32 %v647, %v653
      %v657 = vmax.f32 %v655, 0.0
      %v658 = vmax.f32 %v656, 0.0
      %v659 = vld [vmem:[%s6] sm:$0xff]
      %v660 = vld [vmem:[%s6 + $0x8] sm:$0xff]
      %v661 = vld [vmem:[%s6 + $0x10] sm:$0xff]
      %v662 = vld [vmem:[%s6 + $0x18] sm:$0xff]
      %v664 = vsel %vm180, %v657, 0
      %v667 = vsel %vm180, %v658, 0
      %669 = vmatprep.subr.mxu0 0.0
      %670 = vmatpush1.msra.mxu0 0.0
      %671 = vmatprep.subr.mxu0 0.0
      %672 = vmatpush1.msra.mxu0 0.0
      %673 = vmatprep.subr.mxu0 0.0
      %674 = vmatpush1.msra.mxu0 0.0
      %675 = vmatprep.subr.mxu0 0.0
      %676 = vmatpush1.msra.mxu0 0.0
      %677 = vmatprep.subr.mxu0 0.0
      %678 = vmatpush1.msra.mxu0 0.0
      %679 = vmatprep.subr.mxu0 0.0
      %680 = vmatpush1.msra.mxu0 0.0
      %681 = vmatprep.subr.mxu0 0.0
      %682 = vmatpush1.msra.mxu0 0.0
      %683 = vmatprep.subr.mxu0 0.0
      %684 = vmatpush1.msra.mxu0 0.0
      %685 = vmatprep.subr.mxu0 0.0
      %686 = vmatpush1.msra.mxu0 0.0
      %687 = vmatprep.subr.mxu0 0.0
      %688 = vmatpush1.msra.mxu0 0.0
      %689 = vmatprep.subr.mxu0 0.0
      %690 = vmatpush1.msra.mxu0 0.0
      %691 = vmatprep.subr.mxu0 0.0
      %692 = vmatpush1.msra.mxu0 0.0
      %693 = vmatprep.subr.mxu0 0.0
      %694 = vmatpush1.msra.mxu0 %v662
      %695 = vmatprep.subr.mxu0 0.0
      %696 = vmatpush1.msra.mxu0 %v661
      %697 = vmatprep.subr.mxu0 0.0
      %698 = vmatpush1.msra.mxu0 %v660
      %699 = vmatprep.subr.mxu0 0.0
      %700 = vmatpush1.msra.mxu0 %v659
      %701 = vmatprep.subr.mxu0 0.0
      %702 = vmatpush2.msra.mxu0 0.0
      %703 = vmatprep.subr.mxu0 0.0
      %704 = vmatpush2.msra.mxu0 0.0
      %705 = vmatprep.subr.mxu0 0.0
      %706 = vmatpush2.msra.mxu0 0.0
      %707 = vmatprep.subr.mxu0 0.0
      %708 = vmatpush2.msra.mxu0 0.0
      %709 = vmatprep.subr.mxu0 0.0
      %710 = vmatpush2.msra.mxu0 0.0
      %711 = vmatprep.subr.mxu0 0.0
      %712 = vmatpush2.msra.mxu0 0.0
      %713 = vmatprep.subr.mxu0 0.0
      %714 = vmatpush2.msra.mxu0 0.0
      %715 = vmatprep.subr.mxu0 0.0
      %716 = vmatpush2.msra.mxu0 0.0
      %717 = vmatprep.subr.mxu0 0.0
      %718 = vmatpush2.msra.mxu0 0.0
      %719 = vmatprep.subr.mxu0 0.0
      %720 = vmatpush2.msra.mxu0 0.0
      %721 = vmatprep.subr.mxu0 0.0
      %722 = vmatpush2.msra.mxu0 0.0
      %723 = vmatprep.subr.mxu0 0.0
      %724 = vmatpush2.msra.mxu0 0.0
      %725 = vmatprep.subr.mxu0 0.0
      %726 = vmatpush2.msra.mxu0 0.0
      %727 = vmatprep.subr.mxu0 0.0
      %728 = vmatpush2.msra.mxu0 0.0
      %729 = vmatprep.subr.mxu0 0.0
      %730 = vmatpush2.msra.mxu0 0.0
      %731 = vmatprep.subr.mxu0 0.0
      %732 = vmatpush2.msra.mxu0 0.0
      %733 = vmatprep.mubr.f32.mxu0 0.0
      %734 = vmatmul.mubr.f32.gmra.mxu0 %v664
      %v735 = vpop.f32.mrf.mxu0
      %v736 = vadd.f32 0.0, %v735
      %v737 = vpop.f32.mrf.mxu0
      %738 = vmatprep.mubr.f32.mxu0 0.0
      %739 = vmatmul.mubr.f32.gmra.mxu0 %v667
      %v740 = vpop.f32.mrf.mxu0
      %v741 = vadd.f32 0.0, %v740
      %v742 = vpop.f32.mrf.mxu0
      %743 = vdwg.mxu0
      %744 = vst.msk [vmem:[#allocation4] sm:$0xff] %vm180, %v736
      %745 = vst.msk [vmem:[#allocation4 + $0x8] sm:$0xff] %vm180, %v741
    $region49: #{tpu_custom_call.1} parent=1 // pred_fallthru
      _
    // Predicated region
    $region50: #{tpu_custom_call.1} parent=1 // pred_check
      _
    $region51: #{tpu_custom_call.1} parent=1 // pred_check_branch
      %747 = sbr.rel (0) target = $region53
    $region52: #{tpu_custom_call.1} parent=1 // pred_region
      %s749 = ssub.s32 256, 256
      %750 = vsyncadd [#allocation5], %s749
      %s751 = sshll.u32 [#allocation4], 4
      %s752 = int_to_ptr.vmem [resolvable:$true] %s751
      %757 = dma.vmem_to_hbm [thread:$0]  %s752, 256, %s10, [#allocation5], 128, 128, 8
    $region53: #{tpu_custom_call.1} parent=1 // pred_fallthru
      _
    // Predicated region
    $region54: #{tpu_custom_call.1} parent=1 // pred_check
      _
    $region55: #{tpu_custom_call.1} parent=1 // pred_check_branch
      %759 = sbr.rel (0) target = $region57
    $region56: #{tpu_custom_call.1} parent=1 // pred_region
      %760 = dma.done [#allocation5], 256
    $region57: #{tpu_custom_call.1} parent=1 // pred_fallthru
      _
    %761 = vsyncpa [#allocation5], 1

</llo_original>
